<compile_context>
chip_gen: v5e
topology: v5e:2x2
jax: 0.10.0
libtpu: 0.0.40
codegen_flags: <defaults>
</compile_context>

<pallas_src>
import jax
import jax.numpy as jnp
from jax.experimental import pallas as pl
from jax.experimental.pallas import tpu as pltpu


def _ambiguity_kernel(out_ref, avg_ref, ssq_ref, acc_ref):
    """Accumulate sum((output - pred_avg)^2) over the learner-block grid."""
    i = pl.program_id(0)

    @pl.when(i == 0)
    def _():
        acc_ref[...] = jnp.zeros_like(acc_ref)

    # out_ref: (TL, B, C); avg_ref: (B, C) -> broadcasts over the learner dim.
    diff = out_ref[...] - avg_ref[...]
    # Reduce only over the leading (learner) axis: lane/sublane layout is
    # preserved, so this stays on the VPU.  The cross-lane reduction is
    # deferred to the single finalize step below.
    acc_ref[...] += jnp.sum(diff * diff, axis=0)

    @pl.when(i == pl.num_programs(0) - 1)
    def _():
        ssq_ref[0, 0] = jnp.sum(acc_ref[...])


def ambiguity_loss(output, pred_avg, *, learner_tile_bytes=8 << 20):
    """Pallas implementation of Ambiguity_loss.forward.

    Args:
      output:   [L, B, C] — per-learner outputs.
      pred_avg: [B, C]    — average output over learners.
    Returns:
      scalar float32 loss.
    """
    L, B, C = output.shape
    assert pred_avg.shape == (B, C)

    out32 = output.astype(jnp.float32)
    avg32 = pred_avg.astype(jnp.float32)

    # Pack as many learners per grid step as the VMEM budget allows.
    bytes_per_learner = max(1, B * C * 4)
    tl = max(1, min(L, learner_tile_bytes // bytes_per_learner))
    num_blocks = -(-L // tl)
    pad = num_blocks * tl - L
    if pad:
        # Padding learners equal to pred_avg contribute exactly zero.
        out32 = jnp.concatenate(
            [out32, jnp.broadcast_to(avg32[None], (pad, B, C))], axis=0
        )

    ssq = pl.pallas_call(
        _ambiguity_kernel,
        out_shape=jax.ShapeDtypeStruct((1, 1), jnp.float32),
        grid_spec=pltpu.PrefetchScalarGridSpec(
            num_scalar_prefetch=0,
            grid=(num_blocks,),
            in_specs=[
                # TL learners' full (B, C) outputs per grid step.
                pl.BlockSpec((tl, B, C), lambda i: (i, 0, 0)),
                # pred_avg re-used every step (same block index => resident).
                pl.BlockSpec((B, C), lambda i: (0, 0)),
            ],
            # Scalar sum-of-squares output lives in SMEM, written once.
            out_specs=pl.BlockSpec(memory_space=pltpu.MemorySpace.SMEM),
            # VMEM f32 vector accumulator, resident across the grid.
            scratch_shapes=[pltpu.VMEM((B, C), jnp.float32)],
        ),
        compiler_params=pltpu.CompilerParams(
            dimension_semantics=("arbitrary",),  # reduction axis
            vmem_limit_bytes=32 * 1024 * 1024,
        ),
    )(out32, avg32)

    # molecule / len(pred_avg): len(pred_avg) == B; scale applied outside the
    # kernel so no constant is captured and the per-step path stays minimal.
    return (-0.5 / B) * ssq[0, 0]


if __name__ == "__main__":
    key = jax.random.PRNGKey(0)
    k1, k2 = jax.random.split(key)

    def ref_loss(output, pred_avg):
        diff = output - pred_avg[None]
        return jnp.sum(
            -0.5 * jnp.sum(diff * diff, axis=(1, 2)) / pred_avg.shape[0]
        )

    # Case 1: small lane-aligned shape, single grid step.
    L, B, C = 4, 8, 128
    output = jax.random.normal(k1, (L, B, C), dtype=jnp.float32)
    pred_avg = jnp.mean(output, axis=0)
    loss = ambiguity_loss(output, pred_avg)
    jax.block_until_ready(loss)
    assert jnp.allclose(loss, ref_loss(output, pred_avg), rtol=1e-5, atol=1e-5), (
        loss, ref_loss(output, pred_avg))

    # Case 2: force a multi-step grid (tl=2 over L=5 => 3 blocks, 1 padded
    # learner) to exercise the accumulator / finalize / padding paths.
    L2 = 5
    output2 = jax.random.normal(k2, (L2, B, C), dtype=jnp.float32)
    pred_avg2 = jnp.mean(output2, axis=0)
    loss2 = ambiguity_loss(output2, pred_avg2, learner_tile_bytes=2 * B * C * 4)
    jax.block_until_ready(loss2)
    assert jnp.allclose(loss2, ref_loss(output2, pred_avg2), rtol=1e-5, atol=1e-5), (
        loss2, ref_loss(output2, pred_avg2))

    print("KERNEL_OK")
</pallas_src>

<mosaic_0001>
module attributes {stable_mosaic.version = 11 : i64} {
  func.func @_ambiguity_kernel(%arg0: i32, %arg1: memref<4x8x128xf32, #tpu.memory_space<vmem>>, %arg2: memref<8x128xf32, #tpu.memory_space<vmem>>, %arg3: memref<1x1xf32, #tpu.memory_space<smem>>, %arg4: memref<8x128xf32, #tpu.memory_space<vmem>>) attributes {dimension_semantics = [#tpu.dimension_semantics<arbitrary>], iteration_bounds = array<i64: 1>, scalar_prefetch = 0 : i64, scratch_operands = 1 : i64, tpu.core_type = #tpu.core_type<tc>, window_params = [{transform_indices = @transform_0, window_bounds = array<i64: 4, 8, 128>}, {pipeline_mode = #tpu.pipeline_mode<synchronous>, transform_indices = @transform_1, window_bounds = array<i64: 8, 128>}, {transform_indices = @transform_2, window_bounds = array<i64: 1, 1>}]} {
    %c0_i32 = arith.constant 0 : i32
    %0 = arith.cmpi eq, %arg0, %c0_i32 : i32
    %1 = arith.extui %0 : i1 to i32
    %c0_i32_0 = arith.constant 0 : i32
    %2 = arith.cmpi ne, %1, %c0_i32_0 : i32
    scf.if %2 {
      %cst_11 = arith.constant 0.000000e+00 : f32
      %16 = vector.broadcast %cst_11 : f32 to vector<8x128xf32>
      %c0_12 = arith.constant 0 : index
      %c0_13 = arith.constant 0 : index
      %17 = vector.load %arg4[%c0_12, %c0_13] : memref<8x128xf32, #tpu.memory_space<vmem>>, vector<8x128xf32>
      tpu.vector_store %arg4[%c0_12, %c0_13], %16 {strides = array<i32>} : memref<8x128xf32, #tpu.memory_space<vmem>>, vector<8x128xf32>,
    } else {
    }
    %c0 = arith.constant 0 : index
    %c0_1 = arith.constant 0 : index
    %c0_2 = arith.constant 0 : index
    %3 = vector.load %arg1[%c0, %c0_1, %c0_2] : memref<4x8x128xf32, #tpu.memory_space<vmem>>, vector<4x8x128xf32>
    %c0_3 = arith.constant 0 : index
    %c0_4 = arith.constant 0 : index
    %4 = vector.load %arg2[%c0_3, %c0_4] : memref<8x128xf32, #tpu.memory_space<vmem>>, vector<8x128xf32>
    %5 = vector.shape_cast %4 : vector<8x128xf32> to vector<1x8x128xf32>
    %6 = vector.broadcast %5 : vector<1x8x128xf32> to vector<4x8x128xf32>
    %7 = arith.subf %3, %6 : vector<4x8x128xf32>
    %c0_5 = arith.constant 0 : index
    %c0_6 = arith.constant 0 : index
    %8 = vector.load %arg4[%c0_5, %c0_6] : memref<8x128xf32, #tpu.memory_space<vmem>>, vector<8x128xf32>
    %9 = arith.mulf %7, %7 : vector<4x8x128xf32>
    %cst = arith.constant dense<0.000000e+00> : vector<8x128xf32>
    %10 = vector.multi_reduction <add>, %9, %cst [0] : vector<4x8x128xf32> to vector<8x128xf32>
    %11 = arith.addf %8, %10 : vector<8x128xf32>
    %c0_7 = arith.constant 0 : index
    %c0_8 = arith.constant 0 : index
    %12 = vector.load %arg4[%c0_7, %c0_8] : memref<8x128xf32, #tpu.memory_space<vmem>>, vector<8x128xf32>
    tpu.vector_store %arg4[%c0_7, %c0_8], %11 {strides = array<i32>} : memref<8x128xf32, #tpu.memory_space<vmem>>, vector<8x128xf32>,
    %c0_i32_9 = arith.constant 0 : i32
    %13 = arith.cmpi eq, %arg0, %c0_i32_9 : i32
    %14 = arith.extui %13 : i1 to i32
    %c0_i32_10 = arith.constant 0 : i32
    %15 = arith.cmpi ne, %14, %c0_i32_10 : i32
    scf.if %15 {
      %c0_11 = arith.constant 0 : index
      %c0_12 = arith.constant 0 : index
      %16 = vector.load %arg4[%c0_11, %c0_12] : memref<8x128xf32, #tpu.memory_space<vmem>>, vector<8x128xf32>
      %17 = vector.shape_cast %16 : vector<8x128xf32> to vector<1x8x128xf32>
      %cst_13 = arith.constant dense<0.000000e+00> : vector<1xf32>
      %18 = vector.multi_reduction <add>, %17, %cst_13 [1, 2] : vector<1x8x128xf32> to vector<1xf32>
      %19 = vector.shape_cast %18 : vector<1xf32> to vector<1x1x1xf32>
      %20 = vector.extract %19[0, 0, 0] : f32 from vector<1x1x1xf32>
      %c0_14 = arith.constant 0 : index
      %c0_15 = arith.constant 0 : index
      %21 = memref.load %arg3[%c0_14, %c0_15] : memref<1x1xf32, #tpu.memory_space<smem>>
      memref.store %20, %arg3[%c0_14, %c0_15] : memref<1x1xf32, #tpu.memory_space<smem>>
    } else {
    }
    return
  }
  func.func @transform_0(%arg0: i32) -> (i32, i32, i32) {
    %c0_i32 = arith.constant 0 : i32
    %c0_i32_0 = arith.constant 0 : i32
    %c0_i32_1 = arith.constant 0 : i32
    return %arg0, %c0_i32, %c0_i32_0 : i32, i32, i32
  }
  func.func @transform_1(%arg0: i32) -> (i32, i32) {
    %c0_i32 = arith.constant 0 : i32
    %c0_i32_0 = arith.constant 0 : i32
    %c0_i32_1 = arith.constant 0 : i32
    return %c0_i32, %c0_i32_0 : i32, i32
  }
  func.func @transform_2(%arg0: i32) -> (i32, i32) {
    %c0_i32 = arith.constant 0 : i32
    %c0_i32_0 = arith.constant 0 : i32
    %c0_i32_1 = arith.constant 0 : i32
    return %c0_i32, %c0_i32_0 : i32, i32
  }
}

</mosaic_0001>

<llo_original>
// kernel: tpu_custom_call.1
$region0: #{tpu_custom_call.1}
  #allocation0 [shape = 'u32[]', space=smem, size = 0x4, offset = 0x4, fixed_abs, tag = 'smem constant byte address 0x4 - core index']
  #allocation1 [shape = 'u32[72,128]{1,0:T(1,128)}', space=vmem, size = 0x9000, scoped, tag = 'internal scratch']
  #allocation2 [shape = 'f32[8,128]{1,0:T(8,128)}', space=vmem, size = 0x1000, scoped, tag = 'scratch operand']
  %s0 = inlined_call_operand.hbm [shape: f32[4,8,128], index: 0, kind: input, shape index: {}]
  %s1 = inlined_call_operand.hbm [shape: f32[8,128], index: 1, kind: input, shape index: {}]
  %s2 = inlined_call_operand.hbm [shape: f32[1,1], index: 2, kind: output, shape index: {}]
  %s3 = sld [smem:[#allocation0]]
  $region34: #{tpu_custom_call.1} parent=0
    _
  %s5 = ssub.s32 1, %s3
  %s6 = scalar_select 0, %s5, %s3
  $region1: #{tpu_custom_call.1} parent=0
    #allocation3 [shape = 'u8[16384]{0}', space=vmem, size = 0x4000, scoped, tag = 'input window, operand 0, single buffered']
    #allocation4 [shape = 's32[1]{0}', space=sflag, size = 0x4, scoped, tag = 'scoped memory for tpu_custom_call.1']
    #allocation5 [shape = 's32[1]{0}', space=sflag, size = 0x4, scoped, tag = 'scoped memory for tpu_custom_call.1']
    #allocation6 [shape = 'u8[4096]{0}', space=vmem, size = 0x1000, scoped, tag = 'input window, operand 1, single buffered']
    #allocation7 [shape = 's32[1]{0}', space=sflag, size = 0x4, scoped, tag = 'scoped memory for tpu_custom_call.1']
    #allocation8 [shape = 'u8[512]{0}', space=smem, size = 0x200, scoped, tag = 'output window, operand 0, single buffered']
    %7 = vsyncpa [#allocation4], 0
    %8 = vsyncpa [#allocation7], 0
    %9 = vsyncpa [#allocation5], 0
    // Predicated region
    $region2: #{tpu_custom_call.1} parent=1 // pred_check
      _
    $region3: #{tpu_custom_call.1} parent=1 // pred_check_branch
      %11 = sbr.rel (0) target = $region5
    $region4: #{tpu_custom_call.1} parent=1 // pred_region
      %13 = vsyncadd [#allocation4], 0
      %s14 = sshll.u32 %s0, 4
      %s15 = int_to_ptr.hbm [resolvable:$true] %s14
      %s16 = sshll.u32 [#allocation3], 4
      %s17 = int_to_ptr.vmem [resolvable:$true] %s16
      %22 = dma.hbm_to_vmem [thread:$0]  %s15, 512, %s17, [#allocation4], 128, 128, 8
    $region5: #{tpu_custom_call.1} parent=1 // pred_fallthru
      _
    // Predicated region
    $region6: #{tpu_custom_call.1} parent=1 // pred_check
      _
    $region7: #{tpu_custom_call.1} parent=1 // pred_check_branch
      %24 = sbr.rel (0) target = $region9
    $region8: #{tpu_custom_call.1} parent=1 // pred_region
      %26 = vsyncadd [#allocation7], 0
      %s28 = sshll.u32 %s1, 4
      %s29 = int_to_ptr.hbm [resolvable:$true] %s28
      %s30 = sshll.u32 [#allocation6], 4
      %s31 = int_to_ptr.vmem [resolvable:$true] %s30
      %33 = dma.hbm_to_vmem [thread:$0]  %s29, 128, %s31, [#allocation7]
    $region9: #{tpu_custom_call.1} parent=1 // pred_fallthru
      _
    // Predicated region
    $region10: #{tpu_custom_call.1} parent=1 // pred_check
      _
    $region11: #{tpu_custom_call.1} parent=1 // pred_check_branch
      %35 = sbr.rel (0) target = $region13
    $region12: #{tpu_custom_call.1} parent=1 // pred_region
      %37 = dma.done [#allocation4], 512
    $region13: #{tpu_custom_call.1} parent=1 // pred_fallthru
      _
    // Predicated region
    $region14: #{tpu_custom_call.1} parent=1 // pred_check
      _
    $region15: #{tpu_custom_call.1} parent=1 // pred_check_branch
      %39 = sbr.rel (0) target = $region17
    $region16: #{tpu_custom_call.1} parent=1 // pred_region
      %41 = dma.done [#allocation7], 128
    $region17: #{tpu_custom_call.1} parent=1 // pred_fallthru
      _
    %p42 = scmp.eq.s32.totalorder 0, 0
    // Predicated region
    $region18: #{tpu_custom_call.1} parent=1 // pred_check
      %p43 = pneg %p42
    $region19: #{tpu_custom_call.1} parent=1 // pred_check_branch
      %45 = sbr.rel (%p43) target = $region21
    $region20: #{tpu_custom_call.1} parent=1 // pred_region
      %46 = vst [vmem:[#allocation2] sm:$0xff] 0.0
    $region21: #{tpu_custom_call.1} parent=1 // pred_fallthru
      _
    %v47 = vld [vmem:[#allocation3] sm:$0xff]
    %v48 = vld [vmem:[#allocation3 + $0x8] sm:$0xff]
    %v49 = vld [vmem:[#allocation3 + $0x10] sm:$0xff]
    %v50 = vld [vmem:[#allocation3 + $0x18] sm:$0xff]
    %v51 = vld [vmem:[#allocation6] sm:$0xff]
    %v52 = vsub.f32 %v47, %v51
    %v53 = vsub.f32 %v48, %v51
    %v54 = vsub.f32 %v49, %v51
    %v55 = vsub.f32 %v50, %v51
    %v56 = vld [vmem:[#allocation2] sm:$0xff]
    %v57 = vmul.f32 %v52, %v52
    %v58 = vmul.f32 %v53, %v53
    %v59 = vmul.f32 %v54, %v54
    %v60 = vmul.f32 %v55, %v55
    %v61 = vadd.f32 %v57, %v58
    %v62 = vadd.f32 %v61, %v59
    %v63 = vadd.f32 %v62, %v60
    %v64 = vadd.f32 %v56, %v63
    %65 = vst [vmem:[#allocation2] sm:$0xff] %v64
    // Predicated region
    $region22: #{tpu_custom_call.1} parent=1 // pred_check
      %p66 = pneg %p42
    $region23: #{tpu_custom_call.1} parent=1 // pred_check_branch
      %68 = sbr.rel (%p66) target = $region25
    $region24: #{tpu_custom_call.1} parent=1 // pred_region
      %v69 = vld [vmem:[#allocation2] sm:$0xff]
      %70 = vadd.xlane.f32.xlu0 %v69
      %v71 = vpop.xlane.xlu0 %70
      %v72 = vrot.slane %v71, 4
      %v73 = vadd.f32 %v71, %v72
      %v74 = vrot.slane %v73, 2
      %v75 = vadd.f32 %v73, %v74
      %v76 = vrot.slane %v75, 1
      %v77 = vadd.f32 %v75, %v76
      %s78 = vtos %v77
      %s79 = scalar_lea.smem [#allocation8], 0
      %80 = sst [smem:[%s79]] %s78
    $region25: #{tpu_custom_call.1} parent=1 // pred_fallthru
      _
    // Predicated region
    $region26: #{tpu_custom_call.1} parent=1 // pred_check
      _
    $region27: #{tpu_custom_call.1} parent=1 // pred_check_branch
      %82 = sbr.rel (0) target = $region29
    $region28: #{tpu_custom_call.1} parent=1 // pred_region
      %84 = vsyncadd [#allocation5], 0
      %s86 = sshll.u32 %s2, 4
      %s87 = int_to_ptr.hbm [resolvable:$true] %s86
      %89 = dma.smem_to_hbm [#allocation8], 16, %s87, [#allocation5]
    $region29: #{tpu_custom_call.1} parent=1 // pred_fallthru
      _
    // Predicated region
    $region30: #{tpu_custom_call.1} parent=1 // pred_check
      _
    $region31: #{tpu_custom_call.1} parent=1 // pred_check_branch
      %91 = sbr.rel (0) target = $region33
    $region32: #{tpu_custom_call.1} parent=1 // pred_region
      %93 = dma.done [#allocation5], 16
    $region33: #{tpu_custom_call.1} parent=1 // pred_fallthru
      _
    %94 = sfence
    %95 = vsyncpa [#allocation4], 1
    %96 = vsyncpa [#allocation7], 1
    %97 = vsyncpa [#allocation5], 1

</llo_original>
